<compile_context>
chip_gen: v6e
topology: v6e:2x2x1
jax: 0.10.0
libtpu: 0.0.40
codegen_flags: <defaults>
</compile_context>

<pallas_src>
import functools

import jax
import jax.numpy as jnp
from jax.experimental import pallas as pl
from jax.experimental.pallas import tpu as pltpu


def _uncertainty_kernel(x_ref, w_ref, b_ref, sig_ref, att_ref, *,
                        hw_valid, hw_pad, c_in):
    # x_ref: (C_in, HWp)   w_ref: (c_tile, C_in)   b_ref: (c_tile, 1)  [= bias + 1e-10]
    x = x_ref[...]                          # native dtype -> bf16 goes straight to MXU
    w = w_ref[...]
    b = b_ref[...].astype(jnp.float32)

    # 1x1 conv == channel-mixing matmul.  For tiny channel counts the MXU would be
    # badly under-filled, so do the mix as a handful of broadcast FMAs on the VPU.
    if c_in <= 16:
        wf = w.astype(jnp.float32)
        xf = x.astype(jnp.float32)
        pre = b
        for k in range(c_in):
            pre = pre + wf[:, k:k + 1] * xf[k:k + 1, :]
    else:
        pre = jnp.dot(w, x, preferred_element_type=jnp.float32) + b

    # numerically-stable softplus: max(z,0) + log1p(exp(-|z|))
    sig = jnp.maximum(pre, 0.0) + jnp.log1p(jnp.exp(-jnp.abs(pre)))
    sig_ref[...] = sig.astype(sig_ref.dtype)

    # softmax over the (padded) spatial lane axis; padded columns are excluded from
    # the max/sum (their attention value is garbage but gets sliced off afterwards).
    if hw_valid != hw_pad:
        col = jax.lax.broadcasted_iota(jnp.int32, sig.shape, 1)
        sig_sm = jnp.where(col < hw_valid, sig, -jnp.inf)
    else:
        sig_sm = sig
    m = jnp.max(sig_sm, axis=-1, keepdims=True)
    e = jnp.exp(sig_sm - m)
    denom = jnp.sum(e, axis=-1, keepdims=True)
    att = 1.0 - e * pl.reciprocal(denom, approx=True)
    att_ref[...] = att.astype(att_ref.dtype)


def _pick_c_tile(c):
    for t in (256, 128, 64, 32, 16, 8):
        if c % t == 0:
            return t
    return c  # odd channel count: single full-C tile


def uncertainty_forward(x, w, bias, *, c_tile=None, out_dtype=None):
    """Eval-mode forward of `Uncertainty`.

    x: (B, C, H, W); w: (C, C) 1x1-conv weight; bias: (C,).
    Returns (sample_features=[], mu=x, sig, attention) like the PyTorch module.
    """
    B, C, H, W = x.shape
    HW = H * W
    hw_pad = max(128, ((HW + 127) // 128) * 128)          # lane-dense outputs
    out_dtype = x.dtype if out_dtype is None else out_dtype

    if c_tile is None:
        c_tile = _pick_c_tile(C)
    assert C % c_tile == 0, (C, c_tile)
    n_c = C // c_tile

    x2 = x.reshape(B, C, HW)
    if hw_pad != HW:
        x2 = jnp.pad(x2, ((0, 0), (0, 0), (0, hw_pad - HW)))
    b2 = (bias.astype(jnp.float32) + 1e-10).reshape(C, 1)  # fold the +1e-10 here

    kernel = functools.partial(_uncertainty_kernel,
                               hw_valid=HW, hw_pad=hw_pad, c_in=C)

    out_itemsize = jnp.dtype(out_dtype).itemsize
    cost = pl.CostEstimate(
        flops=2 * B * C * C * hw_pad + 8 * B * C * hw_pad,
        transcendentals=3 * B * C * hw_pad,
        bytes_accessed=int(x2.size * x2.dtype.itemsize
                           + w.size * w.dtype.itemsize
                           + b2.size * 4
                           + 2 * B * C * hw_pad * out_itemsize),
    )

    # Per-step VMEM estimate (double-buffered blocks). Only raise the scoped limit
    # when the defaults would not fit, so small shapes keep the default behavior.
    blk_bytes = (2 * C * hw_pad * x2.dtype.itemsize            # resident x block
                 + 2 * c_tile * C * w.dtype.itemsize           # weight tile
                 + 2 * 2 * c_tile * hw_pad * out_itemsize)     # two output tiles
    vmem_limit = None
    if blk_bytes > 24 * 1024 * 1024:
        vmem_limit = min(int(blk_bytes * 5 // 4), 100 * 1024 * 1024)

    sig_p, att_p = pl.pallas_call(
        kernel,
        out_shape=(
            jax.ShapeDtypeStruct((B, C, hw_pad), out_dtype),
            jax.ShapeDtypeStruct((B, C, hw_pad), out_dtype),
        ),
        grid_spec=pltpu.PrefetchScalarGridSpec(
            num_scalar_prefetch=0,
            grid=(B, n_c),
            in_specs=[
                # full feature map for batch b; constant over c -> stays resident
                pl.BlockSpec((None, C, hw_pad), lambda b, c: (b, 0, 0)),
                # channel tile of the 1x1-conv weight / (pre-folded) bias
                pl.BlockSpec((c_tile, C), lambda b, c: (c, 0)),
                pl.BlockSpec((c_tile, 1), lambda b, c: (c, 0)),
            ],
            out_specs=[
                pl.BlockSpec((None, c_tile, hw_pad), lambda b, c: (b, c, 0)),
                pl.BlockSpec((None, c_tile, hw_pad), lambda b, c: (b, c, 0)),
            ],
        ),
        compiler_params=pltpu.CompilerParams(
            dimension_semantics=("parallel", "parallel"),
            vmem_limit_bytes=vmem_limit,
        ),
        cost_estimate=cost,
    )(x2, w, b2)

    if hw_pad != HW:
        sig_p = sig_p[:, :, :HW]
        att_p = att_p[:, :, :HW]
    sig = sig_p.reshape(B, C, H, W)
    att = att_p.reshape(B, C, H, W)

    sample_features = []  # eval mode: no Monte-Carlo sampling
    mu = x
    return sample_features, mu, sig, att


def _reference(x, w, bias):
    B, C, H, W = x.shape
    pre = jnp.einsum("oc,bchw->bohw", w, x) + bias[None, :, None, None] + 1e-10
    sig = jax.nn.softplus(pre)
    att = 1.0 - jax.nn.softmax(sig.reshape(B, C, -1), axis=-1)
    return sig, att.reshape(B, C, H, W)


def _run_case(key, B, C, H, W, c_tile=None):
    kx, kw, kb = jax.random.split(key, 3)
    x = jax.random.normal(kx, (B, C, H, W), dtype=jnp.float32)
    w = jax.random.normal(kw, (C, C), dtype=jnp.float32) * 0.1
    bias = jax.random.normal(kb, (C,), dtype=jnp.float32) * 0.1

    sample_features, mu, sig, att = uncertainty_forward(x, w, bias, c_tile=c_tile)
    jax.block_until_ready((mu, sig, att))

    sig_ref, att_ref = _reference(x, w, bias)
    assert sample_features == []
    assert jnp.allclose(mu, x)
    assert jnp.max(jnp.abs(sig - sig_ref)) < 1e-4, "sig mismatch"
    assert jnp.max(jnp.abs(att - att_ref)) < 2e-3, "attention mismatch"


if __name__ == "__main__":
    key = jax.random.PRNGKey(0)
    k1, k2 = jax.random.split(key)

    # tiny-channel case (inplanes=8): VPU channel mix, HW=256 already lane-dense.
    _run_case(k1, B=2, C=8, H=16, W=16)
    # wider case: MXU path, two channel tiles, HW=120 padded to 128 (masked softmax).
    _run_case(k2, B=2, C=64, H=12, W=10, c_tile=32)

    print("KERNEL_OK")
</pallas_src>

<mosaic_0001>
module attributes {stable_mosaic.version = 11 : i64} {
  func.func @_uncertainty_kernel(%arg0: i32, %arg1: i32, %arg2: memref<1x8x256xf32, #tpu.memory_space<vmem>>, %arg3: memref<8x8xf32, #tpu.memory_space<vmem>>, %arg4: memref<8x1xf32, #tpu.memory_space<vmem>>, %arg5: memref<1x8x256xf32, #tpu.memory_space<vmem>>, %arg6: memref<1x8x256xf32, #tpu.memory_space<vmem>>) attributes {dimension_semantics = [#tpu.dimension_semantics<parallel>, #tpu.dimension_semantics<parallel>], iteration_bounds = array<i64: 2, 1>, scalar_prefetch = 0 : i64, scratch_operands = 0 : i64, tpu.core_type = #tpu.core_type<tc>, window_params = [{transform_indices = @transform_0, window_bounds = array<i64: 1, 8, 256>}, {transform_indices = @transform_1, window_bounds = array<i64: 8, 8>}, {transform_indices = @transform_2, window_bounds = array<i64: 8, 1>}, {transform_indices = @transform_3, window_bounds = array<i64: 1, 8, 256>}, {transform_indices = @transform_4, window_bounds = array<i64: 1, 8, 256>}]} {
    %c0 = arith.constant 0 : index
    %c0_0 = arith.constant 0 : index
    %c0_1 = arith.constant 0 : index
    %0 = vector.load %arg2[%c0, %c0_0, %c0_1] : memref<1x8x256xf32, #tpu.memory_space<vmem>>, vector<1x8x256xf32>
    %1 = vector.shape_cast %0 : vector<1x8x256xf32> to vector<8x256xf32>
    %c0_2 = arith.constant 0 : index
    %c0_3 = arith.constant 0 : index
    %2 = vector.load %arg3[%c0_2, %c0_3] : memref<8x8xf32, #tpu.memory_space<vmem>>, vector<8x8xf32>
    %c0_4 = arith.constant 0 : index
    %c0_5 = arith.constant 0 : index
    %3 = vector.load %arg4[%c0_4, %c0_5] : memref<8x1xf32, #tpu.memory_space<vmem>>, vector<8x1xf32>
    %4 = vector.extract_strided_slice %2 {offsets = [0, 0], sizes = [8, 1], strides = [1, 1]} : vector<8x8xf32> to vector<8x1xf32>
    %5 = vector.extract_strided_slice %1 {offsets = [0, 0], sizes = [1, 256], strides = [1, 1]} : vector<8x256xf32> to vector<1x256xf32>
    %6 = vector.broadcast %4 : vector<8x1xf32> to vector<8x256xf32>
    %7 = vector.broadcast %5 : vector<1x256xf32> to vector<8x256xf32>
    %8 = arith.mulf %6, %7 : vector<8x256xf32>
    %9 = vector.broadcast %3 : vector<8x1xf32> to vector<8x256xf32>
    %10 = arith.addf %9, %8 : vector<8x256xf32>
    %11 = vector.extract_strided_slice %2 {offsets = [0, 1], sizes = [8, 1], strides = [1, 1]} : vector<8x8xf32> to vector<8x1xf32>
    %12 = vector.extract_strided_slice %1 {offsets = [1, 0], sizes = [1, 256], strides = [1, 1]} : vector<8x256xf32> to vector<1x256xf32>
    %13 = vector.broadcast %11 : vector<8x1xf32> to vector<8x256xf32>
    %14 = vector.broadcast %12 : vector<1x256xf32> to vector<8x256xf32>
    %15 = arith.mulf %13, %14 : vector<8x256xf32>
    %16 = arith.addf %10, %15 : vector<8x256xf32>
    %17 = vector.extract_strided_slice %2 {offsets = [0, 2], sizes = [8, 1], strides = [1, 1]} : vector<8x8xf32> to vector<8x1xf32>
    %18 = vector.extract_strided_slice %1 {offsets = [2, 0], sizes = [1, 256], strides = [1, 1]} : vector<8x256xf32> to vector<1x256xf32>
    %19 = vector.broadcast %17 : vector<8x1xf32> to vector<8x256xf32>
    %20 = vector.broadcast %18 : vector<1x256xf32> to vector<8x256xf32>
    %21 = arith.mulf %19, %20 : vector<8x256xf32>
    %22 = arith.addf %16, %21 : vector<8x256xf32>
    %23 = vector.extract_strided_slice %2 {offsets = [0, 3], sizes = [8, 1], strides = [1, 1]} : vector<8x8xf32> to vector<8x1xf32>
    %24 = vector.extract_strided_slice %1 {offsets = [3, 0], sizes = [1, 256], strides = [1, 1]} : vector<8x256xf32> to vector<1x256xf32>
    %25 = vector.broadcast %23 : vector<8x1xf32> to vector<8x256xf32>
    %26 = vector.broadcast %24 : vector<1x256xf32> to vector<8x256xf32>
    %27 = arith.mulf %25, %26 : vector<8x256xf32>
    %28 = arith.addf %22, %27 : vector<8x256xf32>
    %29 = vector.extract_strided_slice %2 {offsets = [0, 4], sizes = [8, 1], strides = [1, 1]} : vector<8x8xf32> to vector<8x1xf32>
    %30 = vector.extract_strided_slice %1 {offsets = [4, 0], sizes = [1, 256], strides = [1, 1]} : vector<8x256xf32> to vector<1x256xf32>
    %31 = vector.broadcast %29 : vector<8x1xf32> to vector<8x256xf32>
    %32 = vector.broadcast %30 : vector<1x256xf32> to vector<8x256xf32>
    %33 = arith.mulf %31, %32 : vector<8x256xf32>
    %34 = arith.addf %28, %33 : vector<8x256xf32>
    %35 = vector.extract_strided_slice %2 {offsets = [0, 5], sizes = [8, 1], strides = [1, 1]} : vector<8x8xf32> to vector<8x1xf32>
    %36 = vector.extract_strided_slice %1 {offsets = [5, 0], sizes = [1, 256], strides = [1, 1]} : vector<8x256xf32> to vector<1x256xf32>
    %37 = vector.broadcast %35 : vector<8x1xf32> to vector<8x256xf32>
    %38 = vector.broadcast %36 : vector<1x256xf32> to vector<8x256xf32>
    %39 = arith.mulf %37, %38 : vector<8x256xf32>
    %40 = arith.addf %34, %39 : vector<8x256xf32>
    %41 = vector.extract_strided_slice %2 {offsets = [0, 6], sizes = [8, 1], strides = [1, 1]} : vector<8x8xf32> to vector<8x1xf32>
    %42 = vector.extract_strided_slice %1 {offsets = [6, 0], sizes = [1, 256], strides = [1, 1]} : vector<8x256xf32> to vector<1x256xf32>
    %43 = vector.broadcast %41 : vector<8x1xf32> to vector<8x256xf32>
    %44 = vector.broadcast %42 : vector<1x256xf32> to vector<8x256xf32>
    %45 = arith.mulf %43, %44 : vector<8x256xf32>
    %46 = arith.addf %40, %45 : vector<8x256xf32>
    %47 = vector.extract_strided_slice %2 {offsets = [0, 7], sizes = [8, 1], strides = [1, 1]} : vector<8x8xf32> to vector<8x1xf32>
    %48 = vector.extract_strided_slice %1 {offsets = [7, 0], sizes = [1, 256], strides = [1, 1]} : vector<8x256xf32> to vector<1x256xf32>
    %49 = vector.broadcast %47 : vector<8x1xf32> to vector<8x256xf32>
    %50 = vector.broadcast %48 : vector<1x256xf32> to vector<8x256xf32>
    %51 = arith.mulf %49, %50 : vector<8x256xf32>
    %52 = arith.addf %46, %51 : vector<8x256xf32>
    %cst = arith.constant 0.000000e+00 : f32
    %53 = vector.broadcast %cst : f32 to vector<8x256xf32>
    %54 = arith.maximumf %52, %53 : vector<8x256xf32>
    %55 = math.absf %52 : vector<8x256xf32>
    %cst_6 = arith.constant 0.000000e+00 : f32
    %56 = vector.broadcast %cst_6 : f32 to vector<8x256xf32>
    %57 = arith.subf %56, %55 : vector<8x256xf32>
    %58 = math.exp %57 : vector<8x256xf32>
    %59 = math.log1p %58 : vector<8x256xf32>
    %60 = arith.addf %54, %59 : vector<8x256xf32>
    %c0_7 = arith.constant 0 : index
    %c0_8 = arith.constant 0 : index
    %c0_9 = arith.constant 0 : index
    %61 = vector.load %arg5[%c0_7, %c0_8, %c0_9] : memref<1x8x256xf32, #tpu.memory_space<vmem>>, vector<1x8x256xf32>
    %62 = vector.shape_cast %61 : vector<1x8x256xf32> to vector<8x256xf32>
    %63 = vector.shape_cast %60 : vector<8x256xf32> to vector<1x8x256xf32>
    tpu.vector_store %arg5[%c0_7, %c0_8, %c0_9], %63 {strides = array<i32>} : memref<1x8x256xf32, #tpu.memory_space<vmem>>, vector<1x8x256xf32>,
    %cst_10 = arith.constant dense<0xFF800000> : vector<8xf32>
    %64 = vector.multi_reduction <maximumf>, %60, %cst_10 [1] : vector<8x256xf32> to vector<8xf32>
    %65 = vector.shape_cast %64 : vector<8xf32> to vector<8x1xf32>
    %66 = vector.broadcast %65 : vector<8x1xf32> to vector<8x256xf32>
    %67 = arith.subf %60, %66 : vector<8x256xf32>
    %68 = math.exp %67 : vector<8x256xf32>
    %cst_11 = arith.constant dense<0.000000e+00> : vector<8xf32>
    %69 = vector.multi_reduction <add>, %68, %cst_11 [1] : vector<8x256xf32> to vector<8xf32>
    %70 = vector.shape_cast %69 : vector<8xf32> to vector<8x1xf32>
    %71 = tpu.reciprocal %70 {approx = true} : vector<8x1xf32> -> vector<8x1xf32>
    %72 = vector.broadcast %71 : vector<8x1xf32> to vector<8x256xf32>
    %73 = arith.mulf %68, %72 : vector<8x256xf32>
    %cst_12 = arith.constant 1.000000e+00 : f32
    %74 = vector.broadcast %cst_12 : f32 to vector<8x256xf32>
    %75 = arith.subf %74, %73 : vector<8x256xf32>
    %c0_13 = arith.constant 0 : index
    %c0_14 = arith.constant 0 : index
    %c0_15 = arith.constant 0 : index
    %76 = vector.load %arg6[%c0_13, %c0_14, %c0_15] : memref<1x8x256xf32, #tpu.memory_space<vmem>>, vector<1x8x256xf32>
    %77 = vector.shape_cast %76 : vector<1x8x256xf32> to vector<8x256xf32>
    %78 = vector.shape_cast %75 : vector<8x256xf32> to vector<1x8x256xf32>
    tpu.vector_store %arg6[%c0_13, %c0_14, %c0_15], %78 {strides = array<i32>} : memref<1x8x256xf32, #tpu.memory_space<vmem>>, vector<1x8x256xf32>,
    return
  }
  func.func @transform_0(%arg0: i32, %arg1: i32) -> (i32, i32, i32) {
    %c0_i32 = arith.constant 0 : i32
    %c0_i32_0 = arith.constant 0 : i32
    %c0_i32_1 = arith.constant 0 : i32
    return %arg0, %c0_i32, %c0_i32_0 : i32, i32, i32
  }
  func.func @transform_1(%arg0: i32, %arg1: i32) -> (i32, i32) {
    %c0_i32 = arith.constant 0 : i32
    %c0_i32_0 = arith.constant 0 : i32
    return %arg1, %c0_i32 : i32, i32
  }
  func.func @transform_2(%arg0: i32, %arg1: i32) -> (i32, i32) {
    %c0_i32 = arith.constant 0 : i32
    %c0_i32_0 = arith.constant 0 : i32
    return %arg1, %c0_i32 : i32, i32
  }
  func.func @transform_3(%arg0: i32, %arg1: i32) -> (i32, i32, i32) {
    %c0_i32 = arith.constant 0 : i32
    %c0_i32_0 = arith.constant 0 : i32
    return %arg0, %arg1, %c0_i32 : i32, i32, i32
  }
  func.func @transform_4(%arg0: i32, %arg1: i32) -> (i32, i32, i32) {
    %c0_i32 = arith.constant 0 : i32
    %c0_i32_0 = arith.constant 0 : i32
    return %arg0, %arg1, %c0_i32 : i32, i32, i32
  }
}

</mosaic_0001>

<llo_original>
// kernel: tpu_custom_call.1
$region0: #{tpu_custom_call.1}
  #allocation0 [shape = 'u32[]', space=smem, size = 0x4, offset = 0x4, fixed_abs, tag = 'smem constant byte address 0x4 - core index']
  #allocation1 [shape = 'u32[144,128]{1,0:T(1,128)}', space=vmem, size = 0x12000, scoped, tag = 'internal scratch']
  %s0 = inlined_call_operand.hbm [shape: f32[2,8,256], index: 0, kind: input, shape index: {}]
  %s1 = inlined_call_operand.vmem [shape: f32[8,8], index: 1, kind: input, shape index: {}]
  %s2 = inlined_call_operand.vmem [shape: f32[8,1], index: 2, kind: input, shape index: {}]
  %s3 = inlined_call_operand.hbm [shape: f32[2,8,256], index: 3, kind: output, shape index: {0}]
  %s4 = inlined_call_operand.hbm [shape: f32[2,8,256], index: 4, kind: output, shape index: {1}]
  %5 = xla_tuple %s3, %s4
  %s6 = sld [smem:[#allocation0]]
  $region57: #{tpu_custom_call.1} parent=0
    _
  %s8 = ssub.s32 1, %s6
  %s9 = scalar_select 0, %s8, %s6
  $region1: #{tpu_custom_call.1} parent=0
    #allocation2 [shape = 'u8[16384]{0}', space=vmem, size = 0x4000, scoped, tag = 'input window, operand 0']
    #allocation3 [shape = 's32[2]{0}', space=sflag, size = 0x8, scoped, tag = 'scoped memory for tpu_custom_call.1']
    #allocation4 [shape = 's32[2]{0}', space=sflag, size = 0x8, scoped, tag = 'scoped memory for tpu_custom_call.1']
    #allocation5 [shape = 'u8[16384]{0}', space=vmem, size = 0x4000, scoped, tag = 'output window, operand 0']
    #allocation6 [shape = 'u8[16384]{0}', space=vmem, size = 0x4000, scoped, tag = 'output window, operand 1']
    #allocation7 [shape = 's32[2]{0}', space=sflag, size = 0x8, scoped, tag = 'scoped memory for tpu_custom_call.1']
    %10 = vsyncpa [#allocation3], 0
    %s11 = scalar_lea.sflag [#allocation3], 1
    %12 = vsyncpa %s11, 0
    %13 = vsyncpa [#allocation4], 0
    %s14 = scalar_lea.sflag [#allocation4], 1
    %15 = vsyncpa %s14, 0
    %16 = vsyncpa [#allocation7], 0
    %s17 = scalar_lea.sflag [#allocation7], 1
    %18 = vsyncpa %s17, 0
    loop: start=0, step=1, limit=4
    $region2: #{tpu_custom_call.1} parent=1 // loop_pre_header
      _
    $region3: #{tpu_custom_call.1} parent=1 // loop_header
      %s20 = sphi 0, %s24
      %p21 = scmp.ge.s32.totalorder %s20, 4
      %s27 = sphi 0, %s39
      %s28 = sphi 0, %s35
      %s29 = sphi 0, %s27
      %s30 = sphi 0, %s28
      %s31 = sphi 0, %s29
      %s32 = sphi 0, %s30
      %s42 = sphi 0, %s44
      %s45 = sphi 0, %s42
      %s46 = sphi 0, %s45
      %s62 = sphi 0, %s46
      %s68 = sphi 0, %s70
      %s71 = sphi 0, %s68
      %s72 = sphi 0, %s71
      %s88 = sphi 0, %s72
      %s94 = sphi 0, %s96
      %s97 = sphi 0, %s94
      %s98 = sphi 0, %s97
      %s114 = sphi 0, %s98
      %s122 = sphi 0, %s124
      %s125 = sphi 0, %s122
      %s126 = sphi 0, %s125
      %s142 = sphi 0, %s126
      %s150 = sphi 0, %s152
      %s153 = sphi 0, %s150
      %s154 = sphi 0, %s153
      %s170 = sphi 0, %s154
    $region4: #{tpu_custom_call.1} parent=1 // loop_header_branch
      %23 = sbr.rel (%p21) target = $region8
    $region5: #{tpu_custom_call.1} parent=1 // loop_body
      %s25 = ssub.s32 %s20, 1
      %s26 = ssub.s32 %s20, 2
      %s33 = sadd.s32 1, %s28
      %p34 = scmp.ge.s32.totalorder %s33, 1
      %s35 = scalar_select %p34, 0, %s33
      %s36 = sadd.s32 1, %s27
      %s37 = scalar_select %p34, %s36, %s27
      %p38 = scmp.ge.s32.totalorder %s37, 2
      %s39 = scalar_select %p38, 0, %s37
      %s40 = ssub.s32 %s27, %s39
      %p41 = scmp.eq.s32.totalorder %s40, 0
      %s43 = sadd.s32 %s42, 1
      %s44 = scalar_select %p41, %s42, %s43
      %p47 = pneg %p41
      %p48 = scmp.eq.s32.totalorder %s20, 1
      %p49 = por %p47, %p48
      %p50 = scmp.ne.s32.totalorder %s42, %s45
      %p51 = scmp.eq.s32.totalorder %s20, 0
      %p52 = por %p50, %p51
      %p53 = scmp.ne.s32.totalorder %s42, %s45
      %p54 = scmp.eq.s32.totalorder %s25, 1
      %p55 = por %p53, %p54
      %p56 = scmp.ne.s32.totalorder %s45, %s46
      %p57 = scmp.eq.s32.totalorder %s25, 0
      %p58 = por %p56, %p57
      %p59 = scmp.ne.s32.totalorder %s45, %s46
      %p60 = scmp.eq.s32.totalorder %s26, 1
      %p61 = por %p59, %p60
      %p63 = scmp.ne.s32.totalorder %s46, %s62
      %p64 = scmp.eq.s32.totalorder %s26, 0
      %p65 = por %p63, %p64
      %s66 = ssub.s32 %s28, %s35
      %p67 = scmp.eq.s32.totalorder %s66, 0
      %s69 = sadd.s32 %s68, 1
      %s70 = scalar_select %p67, %s68, %s69
      %p73 = pneg %p67
      %p74 = scmp.eq.s32.totalorder %s20, 1
      %p75 = por %p73, %p74
      %p76 = scmp.ne.s32.totalorder %s68, %s71
      %p77 = scmp.eq.s32.totalorder %s20, 0
      %p78 = por %p76, %p77
      %p79 = scmp.ne.s32.totalorder %s68, %s71
      %p80 = scmp.eq.s32.totalorder %s25, 1
      %p81 = por %p79, %p80
      %p82 = scmp.ne.s32.totalorder %s71, %s72
      %p83 = scmp.eq.s32.totalorder %s25, 0
      %p84 = por %p82, %p83
      %p85 = scmp.ne.s32.totalorder %s71, %s72
      %p86 = scmp.eq.s32.totalorder %s26, 1
      %p87 = por %p85, %p86
      %p89 = scmp.ne.s32.totalorder %s72, %s88
      %p90 = scmp.eq.s32.totalorder %s26, 0
      %p91 = por %p89, %p90
      %s92 = ssub.s32 %s28, %s35
      %p93 = scmp.eq.s32.totalorder %s92, 0
      %s95 = sadd.s32 %s94, 1
      %s96 = scalar_select %p93, %s94, %s95
      %p99 = pneg %p93
      %p100 = scmp.eq.s32.totalorder %s20, 1
      %p101 = por %p99, %p100
      %p102 = scmp.ne.s32.totalorder %s94, %s97
      %p103 = scmp.eq.s32.totalorder %s20, 0
      %p104 = por %p102, %p103
      %p105 = scmp.ne.s32.totalorder %s94, %s97
      %p106 = scmp.eq.s32.totalorder %s25, 1
      %p107 = por %p105, %p106
      %p108 = scmp.ne.s32.totalorder %s97, %s98
      %p109 = scmp.eq.s32.totalorder %s25, 0
      %p110 = por %p108, %p109
      %p111 = scmp.ne.s32.totalorder %s97, %s98
      %p112 = scmp.eq.s32.totalorder %s26, 1
      %p113 = por %p111, %p112
      %p115 = scmp.ne.s32.totalorder %s98, %s114
      %p116 = scmp.eq.s32.totalorder %s26, 0
      %p117 = por %p115, %p116
      %s118 = ssub.s32 %s27, %s39
      %s119 = ssub.s32 %s28, %s35
      %s120 = sor.u32 %s118, %s119
      %p121 = scmp.eq.s32.totalorder %s120, 0
      %s123 = sadd.s32 %s122, 1
      %s124 = scalar_select %p121, %s122, %s123
      %p127 = pneg %p121
      %p128 = scmp.eq.s32.totalorder %s20, 1
      %p129 = por %p127, %p128
      %p130 = scmp.ne.s32.totalorder %s122, %s125
      %p131 = scmp.eq.s32.totalorder %s20, 0
      %p132 = por %p130, %p131
      %p133 = scmp.ne.s32.totalorder %s122, %s125
      %p134 = scmp.eq.s32.totalorder %s25, 1
      %p135 = por %p133, %p134
      %p136 = scmp.ne.s32.totalorder %s125, %s126
      %p137 = scmp.eq.s32.totalorder %s25, 0
      %p138 = por %p136, %p137
      %p139 = scmp.ne.s32.totalorder %s125, %s126
      %p140 = scmp.eq.s32.totalorder %s26, 1
      %p141 = por %p139, %p140
      %p143 = scmp.ne.s32.totalorder %s126, %s142
      %p144 = scmp.eq.s32.totalorder %s26, 0
      %p145 = por %p143, %p144
      %s146 = ssub.s32 %s27, %s39
      %s147 = ssub.s32 %s28, %s35
      %s148 = sor.u32 %s146, %s147
      %p149 = scmp.eq.s32.totalorder %s148, 0
      %s151 = sadd.s32 %s150, 1
      %s152 = scalar_select %p149, %s150, %s151
      %p155 = pneg %p149
      %p156 = scmp.eq.s32.totalorder %s20, 1
      %p157 = por %p155, %p156
      %p158 = scmp.ne.s32.totalorder %s150, %s153
      %p159 = scmp.eq.s32.totalorder %s20, 0
      %p160 = por %p158, %p159
      %p161 = scmp.ne.s32.totalorder %s150, %s153
      %p162 = scmp.eq.s32.totalorder %s25, 1
      %p163 = por %p161, %p162
      %p164 = scmp.ne.s32.totalorder %s153, %s154
      %p165 = scmp.eq.s32.totalorder %s25, 0
      %p166 = por %p164, %p165
      %p167 = scmp.ne.s32.totalorder %s153, %s154
      %p168 = scmp.eq.s32.totalorder %s26, 1
      %p169 = por %p167, %p168
      %p171 = scmp.ne.s32.totalorder %s154, %s170
      %p172 = scmp.eq.s32.totalorder %s26, 0
      %p173 = por %p171, %p172
      %p174 = scmp.le.s32.totalorder 1, %s20
      %p175 = scmp.lt.s32.totalorder %s20, 3
      %p176 = pnand %p174, %p175
      %p177 = pneg %p176
      // Predicated region
      $region9: #{tpu_custom_call.1} parent=5 // pred_check
        _
      $region10: #{tpu_custom_call.1} parent=5 // pred_check_branch
        %179 = sbr.rel (%p176) target = $region12
      $region11: #{tpu_custom_call.1} parent=5 // pred_region
        %s180 = ssub.s32 %s20, 1
        // Predicated region
        $region13: #{tpu_custom_call.1} parent=11 // pred_check
          %p181 = pneg %p84
        $region14: #{tpu_custom_call.1} parent=11 // pred_check_branch
          %183 = sbr.rel (%p181) target = $region16
        $region15: #{tpu_custom_call.1} parent=11 // pred_region
          %p184 = scmp.lt.s32.totalorder %s30, 0
          %s185 = scalar_select %p184, %s30, 0
          %s186 = smul.addr %s185, 8
          %s187 = scalar_lea.vmem %s1, %s186
        $region16: #{tpu_custom_call.1} parent=11 // pred_fallthru
          _
        // Predicated region
        $region17: #{tpu_custom_call.1} parent=11 // pred_check
          %p188 = pneg %p110
        $region18: #{tpu_custom_call.1} parent=11 // pred_check_branch
          %190 = sbr.rel (%p188) target = $region20
        $region19: #{tpu_custom_call.1} parent=11 // pred_region
          %p191 = scmp.lt.s32.totalorder %s30, 0
          %s192 = scalar_select %p191, %s30, 0
          %s193 = smul.addr %s192, 8
          %s194 = scalar_lea.vmem %s2, %s193
        $region20: #{tpu_custom_call.1} parent=11 // pred_fallthru
          _
      $region12: #{tpu_custom_call.1} parent=5 // pred_fallthru
        _
      %p195 = scmp.lt.s32.totalorder %s20, 2
      // Predicated region
      $region21: #{tpu_custom_call.1} parent=5 // pred_check
        %p196 = pneg %p195
      $region22: #{tpu_custom_call.1} parent=5 // pred_check_branch
        %198 = sbr.rel (%p196) target = $region24
      $region23: #{tpu_custom_call.1} parent=5 // pred_region
        // Predicated region
        $region25: #{tpu_custom_call.1} parent=23 // pred_check
          %p199 = pneg %p52
        $region26: #{tpu_custom_call.1} parent=23 // pred_check_branch
          %201 = sbr.rel (%p199) target = $region28
        $region27: #{tpu_custom_call.1} parent=23 // pred_region
          %s202 = sand.u32 %s42, 1
          %s203 = scalar_lea.sflag [#allocation3], %s202
          %s204 = sand.u32 %s42, 1
          %s205 = smul.addr %s204, 16
          %s206 = scalar_lea.vmem [#allocation2], %s205
          %s208 = ssub.s32 256, 256
          %209 = vsyncadd %s203, %s208
          %s210 = smul.addr %s27, 2
          %s211 = smul.addr %s210, 128
          %s212 = scalar_lea.hbm %s0, %s211
          %s214 = sshll.u32 %s206, 4
          %s215 = int_to_ptr.vmem [resolvable:$true] %s214
          %217 = dma.hbm_to_vmem [thread:$0]  %s212, 256, %s215, %s203
        $region28: #{tpu_custom_call.1} parent=23 // pred_fallthru
          _
      $region24: #{tpu_custom_call.1} parent=5 // pred_fallthru
        _
      %p218 = scmp.le.s32.totalorder 1, %s20
      %p219 = scmp.lt.s32.totalorder %s20, 3
      %p220 = pnand %p218, %p219
      %p221 = pneg %p220
      // Predicated region
      $region29: #{tpu_custom_call.1} parent=5 // pred_check
        _
      $region30: #{tpu_custom_call.1} parent=5 // pred_check_branch
        %223 = sbr.rel (%p220) target = $region32
      $region31: #{tpu_custom_call.1} parent=5 // pred_region
        %s224 = ssub.s32 %s20, 1
        %s225 = sand.u32 %s45, 1
        %s226 = scalar_lea.sflag [#allocation3], %s225
        %s227 = sand.u32 %s45, 1
        %s228 = smul.addr %s227, 16
        %s229 = scalar_lea.vmem [#allocation2], %s228
        // Predicated region
        $region33: #{tpu_custom_call.1} parent=31 // pred_check
          %p230 = pneg %p58
        $region34: #{tpu_custom_call.1} parent=31 // pred_check_branch
          %232 = sbr.rel (%p230) target = $region36
        $region35: #{tpu_custom_call.1} parent=31 // pred_region
          %233 = dma.done %s226, 256
        $region36: #{tpu_custom_call.1} parent=31 // pred_fallthru
          _
        %s234 = sand.u32 %s45, 1
        %s235 = scalar_lea.sflag [#allocation3], %s234
        %s236 = sand.u32 %s45, 1
        %s237 = smul.addr %s236, 16
        %s238 = scalar_lea.vmem [#allocation2], %s237
        %p239 = pneg %p58
        %p240 = pneg %p55
        %p241 = scmp.lt.s32.totalorder %s30, 0
        %s242 = scalar_select %p241, %s30, 0
        %s243 = smul.addr %s242, 8
        %s244 = scalar_lea.vmem %s1, %s243
        %p245 = pneg %p84
        %p246 = pneg %p81
        %p247 = scmp.lt.s32.totalorder %s30, 0
        %s248 = scalar_select %p247, %s30, 0
        %s249 = smul.addr %s248, 8
        %s250 = scalar_lea.vmem %s2, %s249
        %p251 = pneg %p110
        %p252 = pneg %p107
        %p253 = pneg %p138
        %p254 = pneg %p135
        %s255 = sand.u32 %s125, 1
        %s256 = scalar_lea.sflag [#allocation4], %s255
        %s257 = sand.u32 %s125, 1
        %s258 = smul.addr %s257, 16
        %s259 = scalar_lea.vmem [#allocation5], %s258
        %p260 = pneg %p166
        %p261 = pneg %p163
        %s262 = sand.u32 %s153, 1
        %s263 = scalar_lea.sflag [#allocation7], %s262
        %s264 = sand.u32 %s153, 1
        %s265 = smul.addr %s264, 16
        %s266 = scalar_lea.vmem [#allocation6], %s265
        %p267 = scmp.lt.s32.totalorder %s30, 0
        %s268 = scalar_select %p267, %s30, 0
        %s269 = smul.addr %s268, 8
        %s270 = scalar_lea.vmem %s1, %s269
        %p271 = scmp.lt.s32.totalorder %s30, 0
        %s272 = scalar_select %p271, %s30, 0
        %s273 = smul.addr %s272, 8
        %s274 = scalar_lea.vmem %s2, %s273
        %v275 = vld [vmem:[%s229] sm:$0xff]
        %v276 = vld [vmem:[%s229 + $0x8] sm:$0xff]
        %v277 = vld [vmem:[%s270] sm:$0xff]
        %v278 = vld [vmem:[%s274] sm:$0xff]
        %280 = vset.pattern.permute.xlu0 0
        %281 = vperm.xlu0 %280, %v277
        %v282 = vpop.permute.xlu0 %281
        %v284 = vlaneseq
        %v285 = vshrl.u32 %v284, 7
        %v286 = vsub.s32 0, %v285
        %v287 = vrot.slane %v275, %v286
        %v288 = vlaneseq
        %v289 = vshrl.u32 %v288, 7
        %v290 = vsub.s32 0, %v289
        %v291 = vrot.slane %v276, %v290
        %v292 = vmul.f32 %v282, %v287
        %v293 = vmul.f32 %v282, %v291
        %295 = vset.pattern.permute.xlu0 0
        %296 = vperm.xlu0 %295, %v278
        %v297 = vpop.permute.xlu0 %296
        %v299 = vadd.f32 %v297, %v292
        %v300 = vadd.f32 %v297, %v293
        %301 = vset.pattern.permute.xlu0 1
        %302 = vperm.xlu0 %301, %v277
        %v303 = vpop.permute.xlu0 %302
        %v305 = vlaneseq
        %v306 = vshrl.u32 %v305, 7
        %v307 = vsub.s32 1, %v306
        %v308 = vrot.slane %v275, %v307
        %v309 = vlaneseq
        %v310 = vshrl.u32 %v309, 7
        %v311 = vsub.s32 1, %v310
        %v312 = vrot.slane %v276, %v311
        %v313 = vmul.f32 %v303, %v308
        %v314 = vmul.f32 %v303, %v312
        %v315 = vadd.f32 %v299, %v313
        %v316 = vadd.f32 %v300, %v314
        %317 = vset.pattern.permute.xlu0 2
        %318 = vperm.xlu0 %317, %v277
        %v319 = vpop.permute.xlu0 %318
        %v321 = vlaneseq
        %v322 = vshrl.u32 %v321, 7
        %v323 = vsub.s32 2, %v322
        %v324 = vrot.slane %v275, %v323
        %v325 = vlaneseq
        %v326 = vshrl.u32 %v325, 7
        %v327 = vsub.s32 2, %v326
        %v328 = vrot.slane %v276, %v327
        %v329 = vmul.f32 %v319, %v324
        %v330 = vmul.f32 %v319, %v328
        %v331 = vadd.f32 %v315, %v329
        %v332 = vadd.f32 %v316, %v330
        %333 = vset.pattern.permute.xlu0 3
        %334 = vperm.xlu0 %333, %v277
        %v335 = vpop.permute.xlu0 %334
        %v337 = vlaneseq
        %v338 = vshrl.u32 %v337, 7
        %v339 = vsub.s32 3, %v338
        %v340 = vrot.slane %v275, %v339
        %v341 = vlaneseq
        %v342 = vshrl.u32 %v341, 7
        %v343 = vsub.s32 3, %v342
        %v344 = vrot.slane %v276, %v343
        %v345 = vmul.f32 %v335, %v340
        %v346 = vmul.f32 %v335, %v344
        %v347 = vadd.f32 %v331, %v345
        %v348 = vadd.f32 %v332, %v346
        %349 = vset.pattern.permute.xlu0 4
        %350 = vperm.xlu0 %349, %v277
        %v351 = vpop.permute.xlu0 %350
        %v353 = vlaneseq
        %v354 = vshrl.u32 %v353, 7
        %v355 = vsub.s32 4, %v354
        %v356 = vrot.slane %v275, %v355
        %v357 = vlaneseq
        %v358 = vshrl.u32 %v357, 7
        %v359 = vsub.s32 4, %v358
        %v360 = vrot.slane %v276, %v359
        %v361 = vmul.f32 %v351, %v356
        %v362 = vmul.f32 %v351, %v360
        %v363 = vadd.f32 %v347, %v361
        %v364 = vadd.f32 %v348, %v362
        %365 = vset.pattern.permute.xlu0 5
        %366 = vperm.xlu0 %365, %v277
        %v367 = vpop.permute.xlu0 %366
        %v369 = vlaneseq
        %v370 = vshrl.u32 %v369, 7
        %v371 = vsub.s32 5, %v370
        %v372 = vrot.slane %v275, %v371
        %v373 = vlaneseq
        %v374 = vshrl.u32 %v373, 7
        %v375 = vsub.s32 5, %v374
        %v376 = vrot.slane %v276, %v375
        %v377 = vmul.f32 %v367, %v372
        %v378 = vmul.f32 %v367, %v376
        %v379 = vadd.f32 %v363, %v377
        %v380 = vadd.f32 %v364, %v378
        %381 = vset.pattern.permute.xlu0 6
        %382 = vperm.xlu0 %381, %v277
        %v383 = vpop.permute.xlu0 %382
        %v385 = vlaneseq
        %v386 = vshrl.u32 %v385, 7
        %v387 = vsub.s32 6, %v386
        %v388 = vrot.slane %v275, %v387
        %v389 = vlaneseq
        %v390 = vshrl.u32 %v389, 7
        %v391 = vsub.s32 6, %v390
        %v392 = vrot.slane %v276, %v391
        %v393 = vmul.f32 %v383, %v388
        %v394 = vmul.f32 %v383, %v392
        %v395 = vadd.f32 %v379, %v393
        %v396 = vadd.f32 %v380, %v394
        %397 = vset.pattern.permute.xlu0 7
        %398 = vperm.xlu0 %397, %v277
        %v399 = vpop.permute.xlu0 %398
        %v401 = vlaneseq
        %v402 = vshrl.u32 %v401, 7
        %v403 = vsub.s32 7, %v402
        %v404 = vrot.slane %v275, %v403
        %v405 = vlaneseq
        %v406 = vshrl.u32 %v405, 7
        %v407 = vsub.s32 7, %v406
        %v408 = vrot.slane %v276, %v407
        %v409 = vmul.f32 %v399, %v404
        %v410 = vmul.f32 %v399, %v408
        %v411 = vadd.f32 %v395, %v409
        %v412 = vadd.f32 %v396, %v410
        %v413 = vmax.f32 %v411, 0.0
        %v414 = vmax.f32 %v412, 0.0
        %v415 = vand.u32 2147483647, %v411
        %v416 = vand.u32 2147483647, %v412
        %v417 = vsub.f32 0.0, %v415
        %v418 = vsub.f32 0.0, %v416
        %v419 = vmul.f32 %v417, 1.442695
        %v420 = vpow.pop %v419
        %v421 = vmul.f32 %v418, 1.442695
        %v422 = vpow.pop %v421
        %v423 = vadd.f32 %v420, 1.0
        %v424 = vlog2.pop %v423
        %v425 = vmul.f32 %v424, 0.6931472
        %v426 = vmul.f32 -0.5, %v420
        %v427 = vadd.f32 %v426, 1.0
        %v428 = vmul.f32 %v427, %v420
        %v429 = vand.u32 2147483647, %v420
        %vm430 = vcmp.lt.f32.partialorder %v429, 0.0004427343
        %v431 = vsel %vm430, %v428, %v425
        %v432 = vadd.f32 %v422, 1.0
        %v433 = vlog2.pop %v432
        %v434 = vmul.f32 %v433, 0.6931472
        %v435 = vmul.f32 -0.5, %v422
        %v436 = vadd.f32 %v435, 1.0
        %v437 = vmul.f32 %v436, %v422
        %v438 = vand.u32 2147483647, %v422
        %vm439 = vcmp.lt.f32.partialorder %v438, 0.0004427343
        %v440 = vsel %vm439, %v437, %v434
        %v441 = vadd.f32 %v413, %v431
        %v442 = vadd.f32 %v414, %v440
        %443 = vst [vmem:[%s259] sm:$0xff] %v441
        %444 = vst [vmem:[%s259 + $0x8] sm:$0xff] %v442
        %v445 = vmax.f32 %v441, %v442
        %446 = vmax.xlane.f32.xlu0 %v445
        %v447 = vpop.xlane.xlu0 %446
        %v448 = vsub.f32 %v441, %v447
        %v449 = vsub.f32 %v442, %v447
        %v450 = vmul.f32 %v448, 1.442695
        %v451 = vpow.pop %v450
        %v452 = vmul.f32 %v449, 1.442695
        %v453 = vpow.pop %v452
        %v454 = vadd.f32 %v451, %v453
        %455 = vadd.xlane.f32.xlu0 %v454
        %v456 = vpop.xlane.xlu0 %455
        %v457 = vrcp.pop %v456
        %v458 = vmul.f32 %v451, %v457
        %v459 = vmul.f32 %v453, %v457
        %v460 = vsub.f32 1.0, %v458
        %v461 = vsub.f32 1.0, %v459
        %462 = vst [vmem:[%s266] sm:$0xff] %v460
        %463 = vst [vmem:[%s266 + $0x8] sm:$0xff] %v461
        %s464 = sand.u32 %s125, 1
        %s465 = scalar_lea.sflag [#allocation4], %s464
        %s466 = sand.u32 %s125, 1
        %s467 = smul.addr %s466, 16
        %s468 = scalar_lea.vmem [#allocation5], %s467
        %s469 = sand.u32 %s153, 1
        %s470 = scalar_lea.sflag [#allocation7], %s469
        %s471 = sand.u32 %s153, 1
        %s472 = smul.addr %s471, 16
        %s473 = scalar_lea.vmem [#allocation6], %s472
        // Predicated region
        $region37: #{tpu_custom_call.1} parent=31 // pred_check
          %p474 = pneg %p135
        $region38: #{tpu_custom_call.1} parent=31 // pred_check_branch
          %476 = sbr.rel (%p474) target = $region40
        $region39: #{tpu_custom_call.1} parent=31 // pred_region
          %s478 = ssub.s32 256, 256
          %479 = vsyncadd %s465, %s478
          %s480 = smul.addr %s30, 2
          %s481 = smul.addr %s29, 2
          %s482 = sadd.s32 %s480, %s481
          %s483 = smul.addr %s482, 128
          %s484 = scalar_lea.hbm %s3, %s483
          %s486 = sshll.u32 %s468, 4
          %s487 = int_to_ptr.vmem [resolvable:$true] %s486
          %489 = dma.vmem_to_hbm [thread:$0]  %s487, 256, %s484, %s465
        $region40: #{tpu_custom_call.1} parent=31 // pred_fallthru
          _
        // Predicated region
        $region41: #{tpu_custom_call.1} parent=31 // pred_check
          %p490 = pneg %p163
        $region42: #{tpu_custom_call.1} parent=31 // pred_check_branch
          %492 = sbr.rel (%p490) target = $region44
        $region43: #{tpu_custom_call.1} parent=31 // pred_region
          %s494 = ssub.s32 256, 256
          %495 = vsyncadd %s470, %s494
          %s496 = smul.addr %s30, 2
          %s497 = smul.addr %s29, 2
          %s498 = sadd.s32 %s496, %s497
          %s499 = smul.addr %s498, 128
          %s500 = scalar_lea.hbm %s4, %s499
          %s502 = sshll.u32 %s473, 4
          %s503 = int_to_ptr.vmem [resolvable:$true] %s502
          %505 = dma.vmem_to_hbm [thread:$0]  %s503, 256, %s500, %s470
        $region44: #{tpu_custom_call.1} parent=31 // pred_fallthru
          _
      $region32: #{tpu_custom_call.1} parent=5 // pred_fallthru
        _
      %p506 = scmp.le.s32.totalorder 2, %s20
      // Predicated region
      $region45: #{tpu_custom_call.1} parent=5 // pred_check
        %p507 = pneg %p506
      $region46: #{tpu_custom_call.1} parent=5 // pred_check_branch
        %509 = sbr.rel (%p507) target = $region48
      $region47: #{tpu_custom_call.1} parent=5 // pred_region
        %s510 = ssub.s32 %s20, 2
        // Predicated region
        $region49: #{tpu_custom_call.1} parent=47 // pred_check
          %p511 = pneg %p141
        $region50: #{tpu_custom_call.1} parent=47 // pred_check_branch
          %513 = sbr.rel (%p511) target = $region52
        $region51: #{tpu_custom_call.1} parent=47 // pred_region
          %s514 = sand.u32 %s126, 1
          %s515 = scalar_lea.sflag [#allocation4], %s514
          %s516 = sand.u32 %s126, 1
          %s517 = smul.addr %s516, 16
          %s518 = scalar_lea.vmem [#allocation5], %s517
          %519 = dma.done %s515, 256
        $region52: #{tpu_custom_call.1} parent=47 // pred_fallthru
          _
        // Predicated region
        $region53: #{tpu_custom_call.1} parent=47 // pred_check
          %p520 = pneg %p169
        $region54: #{tpu_custom_call.1} parent=47 // pred_check_branch
          %522 = sbr.rel (%p520) target = $region56
        $region55: #{tpu_custom_call.1} parent=47 // pred_region
          %s523 = sand.u32 %s154, 1
          %s524 = scalar_lea.sflag [#allocation7], %s523
          %s525 = sand.u32 %s154, 1
          %s526 = smul.addr %s525, 16
          %s527 = scalar_lea.vmem [#allocation6], %s526
          %528 = dma.done %s524, 256
        $region56: #{tpu_custom_call.1} parent=47 // pred_fallthru
          _
      $region48: #{tpu_custom_call.1} parent=5 // pred_fallthru
        _
    $region6: #{tpu_custom_call.1} parent=1 // loop_footer
      %s24 = sadd.s32 1, %s20
    $region7: #{tpu_custom_call.1} parent=1 // loop_footer_branch
      %19 = sbr.rel target = $region3
    $region8: #{tpu_custom_call.1} parent=1 // loop_exit
      _
    %529 = vsyncpa [#allocation3], 1
    %s530 = scalar_lea.sflag [#allocation3], 1
    %531 = vsyncpa %s530, 1
    %532 = vsyncpa [#allocation4], 1
    %s533 = scalar_lea.sflag [#allocation4], 1
    %534 = vsyncpa %s533, 1
    %535 = vsyncpa [#allocation7], 1
    %s536 = scalar_lea.sflag [#allocation7], 1
    %537 = vsyncpa %s536, 1

</llo_original>
